<compile_context>
chip_gen: v6e
topology: v6e:2x2x1
jax: 0.10.0
libtpu: 0.0.40
codegen_flags: <defaults>
</compile_context>

<pallas_src>
import functools
import math

import jax
import jax.numpy as jnp
from jax.experimental import pallas as pl
from jax.experimental.pallas import tpu as pltpu


def _tpu_generation():
    try:
        kind = jax.devices()[0].device_kind.lower()
    except Exception:
        return None
    for gen in ("v7", "v6", "v5", "v4"):
        if gen in kind:
            return gen
    return None


_GEN = _tpu_generation()

# Per-buffer block byte budget (generation-aware, see header).
_BLOCK_BYTES_BUDGET = (6 << 20) if _GEN == "v7" else (4 << 20)

# Lane-packed path: cap on PC = lcm(C, 128).  The stats matmul costs ~4*PC
# flops/element, so on v5e (weakest MXU, f32 via multi-pass bf16) only
# PC == 128 stays clearly HBM-bound; v6e/v7x comfortably hide PC = 384.
_MAX_PACKED_LANES = 128 if _GEN == "v5" else 384

# Megacore guard: prefer >= _MIN_GRID_STEPS steps (>= 2 per TensorCore on v7x)
# over one giant block, but never shrink below _MIN_SPLIT_BLOCK_BYTES.
_MIN_GRID_STEPS = 4
_MIN_SPLIT_BLOCK_BYTES = 512 * 1024


def _round_up(v, g):
    return -(-v // g) * g


def _round_down(v, g):
    return max(g, (v // g) * g)


def _row_granule(dtype_bytes):
    # Sublane granularity: 8 for 32-bit, 16 for 16-bit, 32 for 8-bit dtypes.
    return 8 * max(1, 4 // max(dtype_bytes, 1))


def _pick_tile(n_items, item_bytes, granule, block_bytes_budget=None):
    """Largest tile (multiple of `granule`) whose block fits the byte budget,
    shrunk if needed so a large tensor still yields >= _MIN_GRID_STEPS grid
    steps (feeds both TensorCores on v7x).  A block equal to the full axis
    extent is always a legal block shape, so small tensors use one block."""
    budget = _BLOCK_BYTES_BUDGET if block_bytes_budget is None else block_bytes_budget
    t = _round_down(budget // max(item_bytes, 1), granule)
    if t >= n_items:
        t = n_items
    total_bytes = n_items * item_bytes
    steps = -(-n_items // t)
    if (steps < _MIN_GRID_STEPS
            and total_bytes >= _MIN_GRID_STEPS * _MIN_SPLIT_BLOCK_BYTES
            and n_items > granule):
        t_split = max(granule, _round_up(-(-n_items // _MIN_GRID_STEPS), granule))
        t = min(t, t_split)
        if t >= n_items:
            t = n_items
    return t


def _vmem_limit_bytes(tiled_block_bytes, invariant_bytes=0):
    """Scoped-VMEM limit ~ real pipeline footprint (tiled operands are
    double-buffered) + headroom, instead of a flat large claim."""
    limit = 2 * tiled_block_bytes + 2 * invariant_bytes + (8 << 20)
    return int(max(16 << 20, min(limit, 64 << 20)))


# ----------------------------------------------------------------------------
# channels_last, generic kernel: rows of a (R, C) slab, reduce over lanes (C).
# ----------------------------------------------------------------------------
def _layernorm_kernel(x_ref, w_ref, b_ref, o_ref, *, eps):
    x = x_ref[...].astype(jnp.float32)                     # (TR, C)
    mean = jnp.mean(x, axis=-1, keepdims=True)
    xc = x - mean
    var = jnp.mean(xc * xc, axis=-1, keepdims=True)
    inv = jax.lax.rsqrt(var + eps)
    y = xc * inv * w_ref[...] + b_ref[...]
    o_ref[...] = y.astype(o_ref.dtype)


def _layernorm_rows(x2d, weight, bias, eps, tile_rows=None):
    R, C = x2d.shape
    db = x2d.dtype.itemsize
    tr = tile_rows if tile_rows is not None else _pick_tile(R, C * db, _row_granule(db))
    grid = (pl.cdiv(R, tr),)
    w2d = weight.astype(jnp.float32).reshape(1, C)
    b2d = bias.astype(jnp.float32).reshape(1, C)
    cost = pl.CostEstimate(
        flops=int(8 * R * C),
        transcendentals=int(R),
        bytes_accessed=int(2 * R * C * db + 2 * C * 4),
    )
    block_bytes = tr * C * db
    return pl.pallas_call(
        functools.partial(_layernorm_kernel, eps=eps),
        out_shape=jax.ShapeDtypeStruct((R, C), x2d.dtype),
        grid=grid,
        in_specs=[
            pl.BlockSpec((tr, C), lambda i: (i, 0)),
            # Invariant operands: constant block index -> no re-DMA per step.
            pl.BlockSpec((1, C), lambda i: (0, 0)),
            pl.BlockSpec((1, C), lambda i: (0, 0)),
        ],
        out_specs=pl.BlockSpec((tr, C), lambda i: (i, 0)),
        compiler_params=pltpu.CompilerParams(
            dimension_semantics=("parallel",),
            vmem_limit_bytes=_vmem_limit_bytes(2 * block_bytes, 2 * C * 4),
        ),
        cost_estimate=cost,
    )(x2d, w2d, b2d)


# ----------------------------------------------------------------------------
# channels_last, small-C lane-packed kernel: (R, C) viewed as (R/p, p*C) with
# p*C a multiple of 128.  Per-segment stats via a block-diagonal matmul (MXU),
# keeping every load/store lane-dense (unmasked vst).
# ----------------------------------------------------------------------------
def _layernorm_packed_kernel(x_ref, seg_ref, w_ref, b_ref, o_ref, *, eps):
    x = x_ref[...].astype(jnp.float32)                     # (TR, PC)
    seg = seg_ref[...]                                     # (PC, PC) block-diag avg
    # Two *independent* MXU contractions (no dot->dot serial dependency): the
    # per-segment mean and E[x^2] come back already broadcast across PC lanes.
    mean = jnp.dot(x, seg, preferred_element_type=jnp.float32)
    ex2 = jnp.dot(x * x, seg, preferred_element_type=jnp.float32)
    # var = E[x^2] - mean^2: slightly less stable than the centered form for
    # data with large means (fine for normalized activations); clamp guards
    # tiny negatives and the garbage rows of a ragged tail block (masked on
    # store, and the matmul keeps rows independent so they cannot leak).
    var = jnp.maximum(ex2 - mean * mean, 0.0)
    inv = jax.lax.rsqrt(var + eps)
    y = (x - mean) * inv * w_ref[...] + b_ref[...]
    o_ref[...] = y.astype(o_ref.dtype)


def _layernorm_rows_packed(xp, weight, bias, eps, pack):
    Rp, PC = xp.shape                                      # PC = pack * C
    C = PC // pack
    db = xp.dtype.itemsize
    tr = _pick_tile(Rp, PC * db, _row_granule(db))
    grid = (pl.cdiv(Rp, tr),)
    # Block-diagonal averaging matrix: seg[i, j] = 1/C if i, j share a segment.
    # Dot accuracy vs the VPU-reduction reference is validated in the self-test
    # (f32 matmul precision on the MXU is multi-pass bf16 under the hood).
    seg = jnp.kron(jnp.eye(pack, dtype=jnp.float32),
                   jnp.full((C, C), 1.0 / C, dtype=jnp.float32))
    wpk = jnp.tile(weight.astype(jnp.float32), pack).reshape(1, PC)
    bpk = jnp.tile(bias.astype(jnp.float32), pack).reshape(1, PC)
    cost = pl.CostEstimate(
        flops=int(10 * Rp * PC + 4 * Rp * PC * PC),
        transcendentals=int(Rp * PC),
        bytes_accessed=int(2 * Rp * PC * db + PC * PC * 4 + 2 * PC * 4),
    )
    block_bytes = tr * PC * db
    return pl.pallas_call(
        functools.partial(_layernorm_packed_kernel, eps=eps),
        out_shape=jax.ShapeDtypeStruct((Rp, PC), xp.dtype),
        grid=grid,
        in_specs=[
            pl.BlockSpec((tr, PC), lambda i: (i, 0)),
            # Invariant operands (seg, w, b): constant block index -> no re-DMA.
            pl.BlockSpec((PC, PC), lambda i: (0, 0)),
            pl.BlockSpec((1, PC), lambda i: (0, 0)),
            pl.BlockSpec((1, PC), lambda i: (0, 0)),
        ],
        out_specs=pl.BlockSpec((tr, PC), lambda i: (i, 0)),
        compiler_params=pltpu.CompilerParams(
            dimension_semantics=("parallel",),
            vmem_limit_bytes=_vmem_limit_bytes(
                2 * block_bytes, PC * PC * 4 + 2 * PC * 4),
        ),
        cost_estimate=cost,
    )(xp, seg, wpk, bpk)


# ----------------------------------------------------------------------------
# channels_first kernel: x viewed as (N, C, S); C on sublanes, spatial on
# lanes, reduce over sublanes (axis=1).  No wrapper transpose needed.
# ----------------------------------------------------------------------------
def _layernorm_cf_kernel(x_ref, w_ref, b_ref, o_ref, *, eps):
    x = x_ref[...].astype(jnp.float32)                     # (1, C, TS)
    mean = jnp.mean(x, axis=1, keepdims=True)              # (1, 1, TS)
    xc = x - mean
    var = jnp.mean(xc * xc, axis=1, keepdims=True)
    inv = jax.lax.rsqrt(var + eps)
    # w/b are (1, C, 1): the per-step lane-broadcast is measured well under the
    # HBM budget on v5e/v6e; flagged as marginal only on v7x.
    y = xc * inv * w_ref[...] + b_ref[...]
    o_ref[...] = y.astype(o_ref.dtype)


def _layernorm_channels_first(x3d, weight, bias, eps):
    N, C, S = x3d.shape
    db = x3d.dtype.itemsize
    ts = _pick_tile(S, C * db, 128)
    grid = (N, pl.cdiv(S, ts))
    w3d = weight.astype(jnp.float32).reshape(1, C, 1)
    b3d = bias.astype(jnp.float32).reshape(1, C, 1)
    cost = pl.CostEstimate(
        flops=int(8 * N * C * S),
        transcendentals=int(N * S),
        bytes_accessed=int(2 * N * C * S * db + 2 * C * 4),
    )
    block_bytes = C * ts * db
    return pl.pallas_call(
        functools.partial(_layernorm_cf_kernel, eps=eps),
        out_shape=jax.ShapeDtypeStruct((N, C, S), x3d.dtype),
        grid=grid,
        in_specs=[
            pl.BlockSpec((1, C, ts), lambda n, s: (n, 0, s)),
            pl.BlockSpec((1, C, 1), lambda n, s: (0, 0, 0)),
            pl.BlockSpec((1, C, 1), lambda n, s: (0, 0, 0)),
        ],
        out_specs=pl.BlockSpec((1, C, ts), lambda n, s: (n, 0, s)),
        compiler_params=pltpu.CompilerParams(
            dimension_semantics=("parallel", "parallel"),
            vmem_limit_bytes=_vmem_limit_bytes(2 * block_bytes, 2 * C * 4),
        ),
        cost_estimate=cost,
    )(x3d, w3d, b3d)


# ----------------------------------------------------------------------------
# Module wrapper (matches the PyTorch LayerNorm forward semantics).
# ----------------------------------------------------------------------------
def _pack_factor(C):
    """Rows packed per lane-row so the lane axis is a dense multiple of 128."""
    if C >= 128:
        return 1
    PC = math.lcm(C, 128)
    if PC <= _MAX_PACKED_LANES:
        return PC // C
    return 1


class LayerNormPallas:
    """JAX/Pallas port of the PyTorch LayerNorm module (ConvNeXt-3D variant)."""

    def __init__(self, normalized_shape, eps=1e-6, data_format="channels_last"):
        if data_format not in ("channels_last", "channels_first"):
            raise NotImplementedError
        self.normalized_shape = int(normalized_shape)
        self.eps = float(eps)
        self.data_format = data_format
        # Matches nn.Parameter(torch.ones/zeros(C)).
        self.weight = jnp.ones((self.normalized_shape,), dtype=jnp.float32)
        self.bias = jnp.zeros((self.normalized_shape,), dtype=jnp.float32)

    def __call__(self, x):
        C = self.normalized_shape
        if self.data_format == "channels_last":
            # F.layer_norm over the last dim of size C.
            assert x.shape[-1] == C
            lead = x.shape[:-1]
            R = math.prod(lead) if lead else 1
            x2d = x.reshape(R, C)                          # free, layout-preserving
            pack = _pack_factor(C)
            if pack > 1:
                R_main = (R // pack) * pack
                if R_main == R:
                    yp = _layernorm_rows_packed(
                        x2d.reshape(R // pack, pack * C),
                        self.weight, self.bias, self.eps, pack)
                    return yp.reshape(*lead, C)
                if R_main > 0:
                    # Ragged R: keep the bulk rows on the lane-dense packed
                    # path; only the < pack leftover rows take the generic
                    # kernel (losing lane density for the whole tensor costs
                    # far more than this small split/concat).
                    y_main = _layernorm_rows_packed(
                        x2d[:R_main].reshape(R_main // pack, pack * C),
                        self.weight, self.bias, self.eps, pack).reshape(R_main, C)
                    y_tail = _layernorm_rows(
                        x2d[R_main:], self.weight, self.bias, self.eps)
                    return jnp.concatenate([y_main, y_tail], axis=0).reshape(*lead, C)
            y2d = _layernorm_rows(x2d, self.weight, self.bias, self.eps)
            return y2d.reshape(*lead, C)
        else:
            # channels_first: x is (N, C, *spatial); normalize over dim 1.
            assert x.ndim >= 3 and x.shape[1] == C
            N = x.shape[0]
            S = math.prod(x.shape[2:])
            x3d = x.reshape(N, C, S)                       # free, layout-preserving
            y3d = _layernorm_channels_first(x3d, self.weight, self.bias, self.eps)
            return y3d.reshape(x.shape)


# ----------------------------------------------------------------------------
# References + self-test
# ----------------------------------------------------------------------------
def _reference_channels_last(x, w, b, eps):
    mean = jnp.mean(x, axis=-1, keepdims=True)
    var = jnp.mean((x - mean) ** 2, axis=-1, keepdims=True)
    return (x - mean) / jnp.sqrt(var + eps) * w + b


def _reference_channels_first(x, w, b, eps):
    u = jnp.mean(x, axis=1, keepdims=True)
    s = jnp.mean((x - u) ** 2, axis=1, keepdims=True)
    xn = (x - u) / jnp.sqrt(s + eps)
    return w[:, None, None, None] * xn + b[:, None, None, None]


if __name__ == "__main__":
    key = jax.random.PRNGKey(0)
    k1, k2, k3, k4, k5, kw, kb = jax.random.split(key, 7)

    # 1) channels_last, C=32 -> lane-packed kernel (pack=4), R % pack == 0.
    C = 32
    ln = LayerNormPallas(C, eps=1e-6, data_format="channels_last")
    ln.weight = 1.0 + 0.1 * jax.random.normal(kw, (C,), dtype=jnp.float32)
    ln.bias = 0.1 * jax.random.normal(kb, (C,), dtype=jnp.float32)
    x1 = jax.random.normal(k1, (2, 8, 8, C), dtype=jnp.float32)
    y1 = jax.block_until_ready(ln(x1))
    r1 = _reference_channels_last(x1, ln.weight, ln.bias, ln.eps)
    assert y1.shape == x1.shape
    assert jnp.max(jnp.abs(y1 - r1)) < 1e-4

    # 2) channels_last, C=32 with R=30 (not a multiple of pack) -> packed bulk
    #    + generic tail split path.
    x2 = jax.random.normal(k2, (2, 3, 5, C), dtype=jnp.float32)
    y2 = jax.block_until_ready(ln(x2))
    r2 = _reference_channels_last(x2, ln.weight, ln.bias, ln.eps)
    assert y2.shape == x2.shape
    assert jnp.max(jnp.abs(y2 - r2)) < 1e-4

    # 3) channels_last, C=48 -> lcm-based packing (PC=384) on v6e/v7x, generic
    #    lane-ragged path on v5e; both must match the reference.
    C3 = 48
    ln3 = LayerNormPallas(C3, eps=1e-6, data_format="channels_last")
    x3 = jax.random.normal(k3, (2, 4, 8, C3), dtype=jnp.float32)
    y3 = jax.block_until_ready(ln3(x3))
    r3 = _reference_channels_last(x3, ln3.weight, ln3.bias, ln3.eps)
    assert y3.shape == x3.shape
    assert jnp.max(jnp.abs(y3 - r3)) < 1e-4

    # 4) channels_last, lane-dense C=256 via the generic kernel, R=10 with a
    #    forced 8-row tile -> exercises the ragged, masked tail block.
    C4 = 256
    x4 = jax.random.normal(k4, (10, C4), dtype=jnp.float32)
    w4 = jnp.ones((C4,), jnp.float32)
    b4 = jnp.zeros((C4,), jnp.float32)
    y4 = jax.block_until_ready(_layernorm_rows(x4, w4, b4, 1e-6, tile_rows=8))
    r4 = _reference_channels_last(x4, w4, b4, 1e-6)
    assert jnp.max(jnp.abs(y4 - r4)) < 1e-4

    # 5) channels_first (N, C, D, H, W) -> fused layout kernel, no transposes.
    C5 = 256
    ln5 = LayerNormPallas(C5, eps=1e-6, data_format="channels_first")
    ln5.weight = 1.0 + 0.1 * jax.random.normal(kb, (C5,), dtype=jnp.float32)
    ln5.bias = 0.1 * jax.random.normal(kw, (C5,), dtype=jnp.float32)
    x5 = jax.random.normal(k5, (2, C5, 4, 4, 4), dtype=jnp.float32)
    y5 = jax.block_until_ready(ln5(x5))
    r5 = _reference_channels_first(x5, ln5.weight, ln5.bias, ln5.eps)
    assert y5.shape == x5.shape
    assert jnp.max(jnp.abs(y5 - r5)) < 1e-4

    print("KERNEL_OK")
</pallas_src>

<mosaic_0001>
module attributes {stable_mosaic.version = 11 : i64} {
  func.func @_layernorm_packed_kernel(%arg0: i32, %arg1: memref<32x128xf32, #tpu.memory_space<vmem>>, %arg2: memref<128x128xf32, #tpu.memory_space<vmem>>, %arg3: memref<1x128xf32, #tpu.memory_space<vmem>>, %arg4: memref<1x128xf32, #tpu.memory_space<vmem>>, %arg5: memref<32x128xf32, #tpu.memory_space<vmem>>) attributes {dimension_semantics = [#tpu.dimension_semantics<parallel>], iteration_bounds = array<i64: 1>, scalar_prefetch = 0 : i64, scratch_operands = 0 : i64, tpu.core_type = #tpu.core_type<tc>, window_params = [{transform_indices = @transform_0, window_bounds = array<i64: 32, 128>}, {pipeline_mode = #tpu.pipeline_mode<synchronous>, transform_indices = @transform_1, window_bounds = array<i64: 128, 128>}, {pipeline_mode = #tpu.pipeline_mode<synchronous>, transform_indices = @transform_2, window_bounds = array<i64: 1, 128>}, {pipeline_mode = #tpu.pipeline_mode<synchronous>, transform_indices = @transform_3, window_bounds = array<i64: 1, 128>}, {transform_indices = @transform_4, window_bounds = array<i64: 32, 128>}]} {
    %c0 = arith.constant 0 : index
    %c0_0 = arith.constant 0 : index
    %0 = vector.load %arg1[%c0, %c0_0] : memref<32x128xf32, #tpu.memory_space<vmem>>, vector<32x128xf32>
    %c0_1 = arith.constant 0 : index
    %c0_2 = arith.constant 0 : index
    %1 = vector.load %arg2[%c0_1, %c0_2] : memref<128x128xf32, #tpu.memory_space<vmem>>, vector<128x128xf32>
    %cst = arith.constant dense<0.000000e+00> : vector<32x128xf32>
    %2 = tpu.matmul %0, %1, %cst {dimension_numbers = #tpu.dot_dimension_numbers<[1], [0], [0], [1], [0, 0, 1, 1], [], []>} : vector<32x128xf32>, vector<128x128xf32>, vector<32x128xf32> -> vector<32x128xf32>
    %3 = arith.mulf %0, %0 : vector<32x128xf32>
    %cst_3 = arith.constant dense<0.000000e+00> : vector<32x128xf32>
    %4 = tpu.matmul %3, %1, %cst_3 {dimension_numbers = #tpu.dot_dimension_numbers<[1], [0], [0], [1], [0, 0, 1, 1], [], []>} : vector<32x128xf32>, vector<128x128xf32>, vector<32x128xf32> -> vector<32x128xf32>
    %5 = arith.mulf %2, %2 : vector<32x128xf32>
    %6 = arith.subf %4, %5 : vector<32x128xf32>
    %cst_4 = arith.constant 0.000000e+00 : f32
    %7 = vector.broadcast %cst_4 : f32 to vector<32x128xf32>
    %8 = arith.maximumf %6, %7 : vector<32x128xf32>
    %cst_5 = arith.constant 9.99999997E-7 : f32
    %9 = vector.broadcast %cst_5 : f32 to vector<32x128xf32>
    %10 = arith.addf %8, %9 : vector<32x128xf32>
    %11 = math.rsqrt %10 : vector<32x128xf32>
    %12 = arith.subf %0, %2 : vector<32x128xf32>
    %13 = arith.mulf %12, %11 : vector<32x128xf32>
    %c0_6 = arith.constant 0 : index
    %c0_7 = arith.constant 0 : index
    %14 = vector.load %arg3[%c0_6, %c0_7] : memref<1x128xf32, #tpu.memory_space<vmem>>, vector<1x128xf32>
    %15 = vector.broadcast %14 : vector<1x128xf32> to vector<32x128xf32>
    %16 = arith.mulf %13, %15 : vector<32x128xf32>
    %c0_8 = arith.constant 0 : index
    %c0_9 = arith.constant 0 : index
    %17 = vector.load %arg4[%c0_8, %c0_9] : memref<1x128xf32, #tpu.memory_space<vmem>>, vector<1x128xf32>
    %18 = vector.broadcast %17 : vector<1x128xf32> to vector<32x128xf32>
    %19 = arith.addf %16, %18 : vector<32x128xf32>
    %c0_10 = arith.constant 0 : index
    %c0_11 = arith.constant 0 : index
    %20 = vector.load %arg5[%c0_10, %c0_11] : memref<32x128xf32, #tpu.memory_space<vmem>>, vector<32x128xf32>
    tpu.vector_store %arg5[%c0_10, %c0_11], %19 {strides = array<i32>} : memref<32x128xf32, #tpu.memory_space<vmem>>, vector<32x128xf32>,
    return
  }
  func.func @transform_0(%arg0: i32) -> (i32, i32) {
    %c0_i32 = arith.constant 0 : i32
    %c0_i32_0 = arith.constant 0 : i32
    return %arg0, %c0_i32 : i32, i32
  }
  func.func @transform_1(%arg0: i32) -> (i32, i32) {
    %c0_i32 = arith.constant 0 : i32
    %c0_i32_0 = arith.constant 0 : i32
    %c0_i32_1 = arith.constant 0 : i32
    return %c0_i32, %c0_i32_0 : i32, i32
  }
  func.func @transform_2(%arg0: i32) -> (i32, i32) {
    %c0_i32 = arith.constant 0 : i32
    %c0_i32_0 = arith.constant 0 : i32
    %c0_i32_1 = arith.constant 0 : i32
    return %c0_i32, %c0_i32_0 : i32, i32
  }
  func.func @transform_3(%arg0: i32) -> (i32, i32) {
    %c0_i32 = arith.constant 0 : i32
    %c0_i32_0 = arith.constant 0 : i32
    %c0_i32_1 = arith.constant 0 : i32
    return %c0_i32, %c0_i32_0 : i32, i32
  }
  func.func @transform_4(%arg0: i32) -> (i32, i32) {
    %c0_i32 = arith.constant 0 : i32
    %c0_i32_0 = arith.constant 0 : i32
    return %arg0, %c0_i32 : i32, i32
  }
}

</mosaic_0001>

<llo_original>
// kernel: tpu_custom_call.1
$region0: #{tpu_custom_call.1}
  #allocation0 [shape = 'u32[]', space=smem, size = 0x4, offset = 0x4, fixed_abs, tag = 'smem constant byte address 0x4 - core index']
  #allocation1 [shape = 'u32[144,128]{1,0:T(1,128)}', space=vmem, size = 0x12000, scoped, tag = 'internal scratch']
  %s0 = inlined_call_operand.hbm [shape: f32[32,128], index: 0, kind: input, shape index: {}]
  %s1 = inlined_call_operand.hbm [shape: f32[128,128], index: 1, kind: input, shape index: {}]
  %s2 = inlined_call_operand.vmem [shape: f32[1,128], index: 2, kind: input, shape index: {}]
  %s3 = inlined_call_operand.vmem [shape: f32[1,128], index: 3, kind: input, shape index: {}]
  %s4 = inlined_call_operand.hbm [shape: f32[32,128], index: 4, kind: output, shape index: {}]
  %s5 = sld [smem:[#allocation0]]
  $region34: #{tpu_custom_call.1} parent=0
    _
  %s7 = ssub.s32 1, %s5
  %s8 = scalar_select 0, %s7, %s5
  $region1: #{tpu_custom_call.1} parent=0
    #allocation2 [shape = 'u8[16384]{0}', space=vmem, size = 0x4000, scoped, tag = 'input window, operand 0, single buffered']
    #allocation3 [shape = 's32[1]{0}', space=sflag, size = 0x4, scoped, tag = 'scoped memory for tpu_custom_call.1']
    #allocation4 [shape = 's32[1]{0}', space=sflag, size = 0x4, scoped, tag = 'scoped memory for tpu_custom_call.1']
    #allocation5 [shape = 'u8[65536]{0}', space=vmem, size = 0x10000, scoped, tag = 'input window, operand 1, single buffered']
    #allocation6 [shape = 's32[1]{0}', space=sflag, size = 0x4, scoped, tag = 'scoped memory for tpu_custom_call.1']
    #allocation7 [shape = 'u8[16384]{0}', space=vmem, size = 0x4000, scoped, tag = 'output window, operand 0, single buffered']
    %9 = vsyncpa [#allocation3], 0
    %10 = vsyncpa [#allocation6], 0
    %11 = vsyncpa [#allocation4], 0
    // Predicated region
    $region2: #{tpu_custom_call.1} parent=1 // pred_check
      _
    $region3: #{tpu_custom_call.1} parent=1 // pred_check_branch
      %13 = sbr.rel (0) target = $region5
    $region4: #{tpu_custom_call.1} parent=1 // pred_region
      %s15 = ssub.s32 512, 512
      %16 = vsyncadd [#allocation3], %s15
      %s17 = sshll.u32 [#allocation2], 4
      %s18 = int_to_ptr.vmem [resolvable:$true] %s17
      %23 = dma.hbm_to_vmem [thread:$0]  %s0, 512, %s18, [#allocation3], 128, 128, 8
    $region5: #{tpu_custom_call.1} parent=1 // pred_fallthru
      _
    // Predicated region
    $region6: #{tpu_custom_call.1} parent=1 // pred_check
      _
    $region7: #{tpu_custom_call.1} parent=1 // pred_check_branch
      %25 = sbr.rel (0) target = $region9
    $region8: #{tpu_custom_call.1} parent=1 // pred_region
      %s27 = ssub.s32 2048, 2048
      %28 = vsyncadd [#allocation6], %s27
      %s29 = sshll.u32 [#allocation5], 4
      %s30 = int_to_ptr.vmem [resolvable:$true] %s29
      %35 = dma.hbm_to_vmem [thread:$0]  %s1, 2048, %s30, [#allocation6], 128, 128, 8
    $region9: #{tpu_custom_call.1} parent=1 // pred_fallthru
      _
    // Predicated region
    $region10: #{tpu_custom_call.1} parent=1 // pred_check
      _
    $region11: #{tpu_custom_call.1} parent=1 // pred_check_branch
      %37 = sbr.rel (0) target = $region13
    $region12: #{tpu_custom_call.1} parent=1 // pred_region
      _
    $region13: #{tpu_custom_call.1} parent=1 // pred_fallthru
      _
    // Predicated region
    $region14: #{tpu_custom_call.1} parent=1 // pred_check
      _
    $region15: #{tpu_custom_call.1} parent=1 // pred_check_branch
      %39 = sbr.rel (0) target = $region17
    $region16: #{tpu_custom_call.1} parent=1 // pred_region
      _
    $region17: #{tpu_custom_call.1} parent=1 // pred_fallthru
      _
    // Predicated region
    $region18: #{tpu_custom_call.1} parent=1 // pred_check
      _
    $region19: #{tpu_custom_call.1} parent=1 // pred_check_branch
      %41 = sbr.rel (0) target = $region21
    $region20: #{tpu_custom_call.1} parent=1 // pred_region
      %42 = dma.done [#allocation3], 512
    $region21: #{tpu_custom_call.1} parent=1 // pred_fallthru
      _
    // Predicated region
    $region22: #{tpu_custom_call.1} parent=1 // pred_check
      _
    $region23: #{tpu_custom_call.1} parent=1 // pred_check_branch
      %44 = sbr.rel (0) target = $region25
    $region24: #{tpu_custom_call.1} parent=1 // pred_region
      %45 = dma.done [#allocation6], 2048
    $region25: #{tpu_custom_call.1} parent=1 // pred_fallthru
      _
    %v46 = vld [vmem:[#allocation2] sm:$0xff]
    %v47 = vld [vmem:[#allocation2 + $0x8] sm:$0xff]
    %v48 = vld [vmem:[#allocation2 + $0x10] sm:$0xff]
    %v49 = vld [vmem:[#allocation2 + $0x18] sm:$0xff]
    %v50 = vld [vmem:[#allocation5] sm:$0xff]
    %v51 = vld [vmem:[#allocation5 + $0x8] sm:$0xff]
    %v52 = vld [vmem:[#allocation5 + $0x10] sm:$0xff]
    %v53 = vld [vmem:[#allocation5 + $0x18] sm:$0xff]
    %v54 = vld [vmem:[#allocation5 + $0x20] sm:$0xff]
    %v55 = vld [vmem:[#allocation5 + $0x28] sm:$0xff]
    %v56 = vld [vmem:[#allocation5 + $0x30] sm:$0xff]
    %v57 = vld [vmem:[#allocation5 + $0x38] sm:$0xff]
    %v58 = vld [vmem:[#allocation5 + $0x40] sm:$0xff]
    %v59 = vld [vmem:[#allocation5 + $0x48] sm:$0xff]
    %v60 = vld [vmem:[#allocation5 + $0x50] sm:$0xff]
    %v61 = vld [vmem:[#allocation5 + $0x58] sm:$0xff]
    %v62 = vld [vmem:[#allocation5 + $0x60] sm:$0xff]
    %v63 = vld [vmem:[#allocation5 + $0x68] sm:$0xff]
    %v64 = vld [vmem:[#allocation5 + $0x70] sm:$0xff]
    %v65 = vld [vmem:[#allocation5 + $0x78] sm:$0xff]
    %66 = vmatprep.subr.mxu0 0.0
    %67 = vmatpush1.msra.mxu0 %v65
    %68 = vmatprep.subr.mxu0 0.0
    %69 = vmatpush1.msra.mxu0 %v64
    %70 = vmatprep.subr.mxu0 0.0
    %71 = vmatpush1.msra.mxu0 %v63
    %72 = vmatprep.subr.mxu0 0.0
    %73 = vmatpush1.msra.mxu0 %v62
    %74 = vmatprep.subr.mxu0 0.0
    %75 = vmatpush1.msra.mxu0 %v61
    %76 = vmatprep.subr.mxu0 0.0
    %77 = vmatpush1.msra.mxu0 %v60
    %78 = vmatprep.subr.mxu0 0.0
    %79 = vmatpush1.msra.mxu0 %v59
    %80 = vmatprep.subr.mxu0 0.0
    %81 = vmatpush1.msra.mxu0 %v58
    %82 = vmatprep.subr.mxu0 0.0
    %83 = vmatpush1.msra.mxu0 %v57
    %84 = vmatprep.subr.mxu0 0.0
    %85 = vmatpush1.msra.mxu0 %v56
    %86 = vmatprep.subr.mxu0 0.0
    %87 = vmatpush1.msra.mxu0 %v55
    %88 = vmatprep.subr.mxu0 0.0
    %89 = vmatpush1.msra.mxu0 %v54
    %90 = vmatprep.subr.mxu0 0.0
    %91 = vmatpush1.msra.mxu0 %v53
    %92 = vmatprep.subr.mxu0 0.0
    %93 = vmatpush1.msra.mxu0 %v52
    %94 = vmatprep.subr.mxu0 0.0
    %95 = vmatpush1.msra.mxu0 %v51
    %96 = vmatprep.subr.mxu0 0.0
    %97 = vmatpush1.msra.mxu0 %v50
    %98 = vmatprep.subr.mxu0 0.0
    %99 = vmatpush2.msra.mxu0 0.0
    %100 = vmatprep.subr.mxu0 0.0
    %101 = vmatpush2.msra.mxu0 0.0
    %102 = vmatprep.subr.mxu0 0.0
    %103 = vmatpush2.msra.mxu0 0.0
    %104 = vmatprep.subr.mxu0 0.0
    %105 = vmatpush2.msra.mxu0 0.0
    %106 = vmatprep.subr.mxu0 0.0
    %107 = vmatpush2.msra.mxu0 0.0
    %108 = vmatprep.subr.mxu0 0.0
    %109 = vmatpush2.msra.mxu0 0.0
    %110 = vmatprep.subr.mxu0 0.0
    %111 = vmatpush2.msra.mxu0 0.0
    %112 = vmatprep.subr.mxu0 0.0
    %113 = vmatpush2.msra.mxu0 0.0
    %114 = vmatprep.subr.mxu0 0.0
    %115 = vmatpush2.msra.mxu0 0.0
    %116 = vmatprep.subr.mxu0 0.0
    %117 = vmatpush2.msra.mxu0 0.0
    %118 = vmatprep.subr.mxu0 0.0
    %119 = vmatpush2.msra.mxu0 0.0
    %120 = vmatprep.subr.mxu0 0.0
    %121 = vmatpush2.msra.mxu0 0.0
    %122 = vmatprep.subr.mxu0 0.0
    %123 = vmatpush2.msra.mxu0 0.0
    %124 = vmatprep.subr.mxu0 0.0
    %125 = vmatpush2.msra.mxu0 0.0
    %126 = vmatprep.subr.mxu0 0.0
    %127 = vmatpush2.msra.mxu0 0.0
    %128 = vmatprep.subr.mxu0 0.0
    %129 = vmatpush2.msra.mxu0 0.0
    %130 = vmatprep.mubr.f32.mxu0 0.0
    %131 = vmatmul.mubr.f32.gmra.mxu0 %v46
    %v132 = vpop.f32.mrf.mxu0
    %v133 = vadd.f32 0.0, %v132
    %v134 = vpop.f32.mrf.mxu0
    %135 = vmatprep.mubr.f32.mxu0 0.0
    %136 = vmatmul.mubr.f32.gmra.mxu0 %v47
    %v137 = vpop.f32.mrf.mxu0
    %v138 = vadd.f32 0.0, %v137
    %v139 = vpop.f32.mrf.mxu0
    %140 = vmatprep.mubr.f32.mxu0 0.0
    %141 = vmatmul.mubr.f32.gmra.mxu0 %v48
    %v142 = vpop.f32.mrf.mxu0
    %v143 = vadd.f32 0.0, %v142
    %v144 = vpop.f32.mrf.mxu0
    %145 = vmatprep.mubr.f32.mxu0 0.0
    %146 = vmatmul.mubr.f32.gmra.mxu0 %v49
    %v147 = vpop.f32.mrf.mxu0
    %v148 = vadd.f32 0.0, %v147
    %v149 = vpop.f32.mrf.mxu0
    %150 = vdwg.mxu0
    %v151 = vmul.f32 %v46, %v46
    %v152 = vmul.f32 %v47, %v47
    %v153 = vmul.f32 %v48, %v48
    %v154 = vmul.f32 %v49, %v49
    %155 = vmatprep.subr.mxu0 0.0
    %156 = vmatpush1.msra.mxu0 %v65
    %157 = vmatprep.subr.mxu0 0.0
    %158 = vmatpush1.msra.mxu0 %v64
    %159 = vmatprep.subr.mxu0 0.0
    %160 = vmatpush1.msra.mxu0 %v63
    %161 = vmatprep.subr.mxu0 0.0
    %162 = vmatpush1.msra.mxu0 %v62
    %163 = vmatprep.subr.mxu0 0.0
    %164 = vmatpush1.msra.mxu0 %v61
    %165 = vmatprep.subr.mxu0 0.0
    %166 = vmatpush1.msra.mxu0 %v60
    %167 = vmatprep.subr.mxu0 0.0
    %168 = vmatpush1.msra.mxu0 %v59
    %169 = vmatprep.subr.mxu0 0.0
    %170 = vmatpush1.msra.mxu0 %v58
    %171 = vmatprep.subr.mxu0 0.0
    %172 = vmatpush1.msra.mxu0 %v57
    %173 = vmatprep.subr.mxu0 0.0
    %174 = vmatpush1.msra.mxu0 %v56
    %175 = vmatprep.subr.mxu0 0.0
    %176 = vmatpush1.msra.mxu0 %v55
    %177 = vmatprep.subr.mxu0 0.0
    %178 = vmatpush1.msra.mxu0 %v54
    %179 = vmatprep.subr.mxu0 0.0
    %180 = vmatpush1.msra.mxu0 %v53
    %181 = vmatprep.subr.mxu0 0.0
    %182 = vmatpush1.msra.mxu0 %v52
    %183 = vmatprep.subr.mxu0 0.0
    %184 = vmatpush1.msra.mxu0 %v51
    %185 = vmatprep.subr.mxu0 0.0
    %186 = vmatpush1.msra.mxu0 %v50
    %187 = vmatprep.subr.mxu0 0.0
    %188 = vmatpush2.msra.mxu0 0.0
    %189 = vmatprep.subr.mxu0 0.0
    %190 = vmatpush2.msra.mxu0 0.0
    %191 = vmatprep.subr.mxu0 0.0
    %192 = vmatpush2.msra.mxu0 0.0
    %193 = vmatprep.subr.mxu0 0.0
    %194 = vmatpush2.msra.mxu0 0.0
    %195 = vmatprep.subr.mxu0 0.0
    %196 = vmatpush2.msra.mxu0 0.0
    %197 = vmatprep.subr.mxu0 0.0
    %198 = vmatpush2.msra.mxu0 0.0
    %199 = vmatprep.subr.mxu0 0.0
    %200 = vmatpush2.msra.mxu0 0.0
    %201 = vmatprep.subr.mxu0 0.0
    %202 = vmatpush2.msra.mxu0 0.0
    %203 = vmatprep.subr.mxu0 0.0
    %204 = vmatpush2.msra.mxu0 0.0
    %205 = vmatprep.subr.mxu0 0.0
    %206 = vmatpush2.msra.mxu0 0.0
    %207 = vmatprep.subr.mxu0 0.0
    %208 = vmatpush2.msra.mxu0 0.0
    %209 = vmatprep.subr.mxu0 0.0
    %210 = vmatpush2.msra.mxu0 0.0
    %211 = vmatprep.subr.mxu0 0.0
    %212 = vmatpush2.msra.mxu0 0.0
    %213 = vmatprep.subr.mxu0 0.0
    %214 = vmatpush2.msra.mxu0 0.0
    %215 = vmatprep.subr.mxu0 0.0
    %216 = vmatpush2.msra.mxu0 0.0
    %217 = vmatprep.subr.mxu0 0.0
    %218 = vmatpush2.msra.mxu0 0.0
    %219 = vmatprep.mubr.f32.mxu0 0.0
    %220 = vmatmul.mubr.f32.gmra.mxu0 %v151
    %v221 = vpop.f32.mrf.mxu0
    %v222 = vadd.f32 0.0, %v221
    %v223 = vpop.f32.mrf.mxu0
    %224 = vmatprep.mubr.f32.mxu0 0.0
    %225 = vmatmul.mubr.f32.gmra.mxu0 %v152
    %v226 = vpop.f32.mrf.mxu0
    %v227 = vadd.f32 0.0, %v226
    %v228 = vpop.f32.mrf.mxu0
    %229 = vmatprep.mubr.f32.mxu0 0.0
    %230 = vmatmul.mubr.f32.gmra.mxu0 %v153
    %v231 = vpop.f32.mrf.mxu0
    %v232 = vadd.f32 0.0, %v231
    %v233 = vpop.f32.mrf.mxu0
    %234 = vmatprep.mubr.f32.mxu0 0.0
    %235 = vmatmul.mubr.f32.gmra.mxu0 %v154
    %v236 = vpop.f32.mrf.mxu0
    %v237 = vadd.f32 0.0, %v236
    %v238 = vpop.f32.mrf.mxu0
    %239 = vdwg.mxu0
    %v240 = vmul.f32 %v133, %v133
    %v241 = vmul.f32 %v138, %v138
    %v242 = vmul.f32 %v143, %v143
    %v243 = vmul.f32 %v148, %v148
    %v244 = vsub.f32 %v222, %v240
    %v245 = vsub.f32 %v227, %v241
    %v246 = vsub.f32 %v232, %v242
    %v247 = vsub.f32 %v237, %v243
    %v248 = vmax.f32 %v244, 0.0
    %v249 = vmax.f32 %v245, 0.0
    %v250 = vmax.f32 %v246, 0.0
    %v251 = vmax.f32 %v247, 0.0
    %v252 = vadd.f32 %v248, 1e-06
    %v253 = vadd.f32 %v249, 1e-06
    %v254 = vadd.f32 %v250, 1e-06
    %v255 = vadd.f32 %v251, 1e-06
    %v256 = vrsqrt.pop %v252
    %v257 = vrsqrt.pop %v253
    %v258 = vrsqrt.pop %v254
    %v259 = vrsqrt.pop %v255
    %v260 = vsub.f32 %v46, %v133
    %v261 = vsub.f32 %v47, %v138
    %v262 = vsub.f32 %v48, %v143
    %v263 = vsub.f32 %v49, %v148
    %v264 = vmul.f32 %v260, %v256
    %v265 = vmul.f32 %v261, %v257
    %v266 = vmul.f32 %v262, %v258
    %v267 = vmul.f32 %v263, %v259
    %v268 = vld [vmem:[%s2] sm:$0x1]
    %v270 = vlaneseq
    %v271 = vshrl.u32 %v270, 7
    %v272 = vsub.s32 0, %v271
    %v273 = vrot.slane %v268, %v272
    %v275 = vmul.f32 %v264, %v273
    %v276 = vmul.f32 %v265, %v273
    %v277 = vmul.f32 %v266, %v273
    %v278 = vmul.f32 %v267, %v273
    %v279 = vld [vmem:[%s3] sm:$0x1]
    %v281 = vlaneseq
    %v282 = vshrl.u32 %v281, 7
    %v283 = vsub.s32 0, %v282
    %v284 = vrot.slane %v279, %v283
    %v286 = vadd.f32 %v275, %v284
    %v287 = vadd.f32 %v276, %v284
    %v288 = vadd.f32 %v277, %v284
    %v289 = vadd.f32 %v278, %v284
    %290 = vst [vmem:[#allocation7] sm:$0xff] %v286
    %291 = vst [vmem:[#allocation7 + $0x8] sm:$0xff] %v287
    %292 = vst [vmem:[#allocation7 + $0x10] sm:$0xff] %v288
    %293 = vst [vmem:[#allocation7 + $0x18] sm:$0xff] %v289
    // Predicated region
    $region26: #{tpu_custom_call.1} parent=1 // pred_check
      _
    $region27: #{tpu_custom_call.1} parent=1 // pred_check_branch
      %295 = sbr.rel (0) target = $region29
    $region28: #{tpu_custom_call.1} parent=1 // pred_region
      %s297 = ssub.s32 512, 512
      %298 = vsyncadd [#allocation4], %s297
      %s299 = sshll.u32 [#allocation7], 4
      %s300 = int_to_ptr.vmem [resolvable:$true] %s299
      %305 = dma.vmem_to_hbm [thread:$0]  %s300, 512, %s4, [#allocation4], 128, 128, 8
    $region29: #{tpu_custom_call.1} parent=1 // pred_fallthru
      _
    // Predicated region
    $region30: #{tpu_custom_call.1} parent=1 // pred_check
      _
    $region31: #{tpu_custom_call.1} parent=1 // pred_check_branch
      %307 = sbr.rel (0) target = $region33
    $region32: #{tpu_custom_call.1} parent=1 // pred_region
      %308 = dma.done [#allocation4], 512
    $region33: #{tpu_custom_call.1} parent=1 // pred_fallthru
      _
    %309 = vsyncpa [#allocation3], 1
    %310 = vsyncpa [#allocation6], 1
    %311 = vsyncpa [#allocation4], 1

</llo_original>
